<compile_context>
chip_gen: v5e
topology: v5e:2x2
jax: 0.10.0
libtpu: 0.0.40
codegen_flags: <defaults>
</compile_context>

<pallas_src>
import functools

import jax
import jax.numpy as jnp
from jax import lax
from jax.experimental import pallas as pl
from jax.experimental.pallas import tpu as pltpu

_LANE = 128
_MAX_CHUNKS = 256                      # cap on unrolled 128-lane chunks per tile
_MAX_TL = _MAX_CHUNKS * _LANE


def _round_up(a, b):
    return -(-a // b) * b


def _sublane(dtype):
    # sublane height of one packed (sublane, 128) VMEM tile for this dtype
    return {4: 8, 2: 16, 1: 32}.get(jnp.dtype(dtype).itemsize, 8)


def _neg_limit(dtype):
    dt = jnp.dtype(dtype)
    if jnp.issubdtype(dt, jnp.floating):
        return float("-inf")
    return int(jnp.iinfo(dt).min)


def _device_vmem_bytes():
    try:
        cap = getattr(pltpu.get_tpu_info(), "vmem_capacity_bytes", None)
        if cap:
            return int(cap)
    except Exception:
        pass
    return 64 * 2**20                  # conservative (v7x per-TensorCore VMEM)


def _tree_max(chunks):
    """Pairwise (log2-depth) elementwise max of equal-shape arrays (pure VPU)."""
    chunks = list(chunks)
    while len(chunks) > 1:
        nxt = [jnp.maximum(chunks[i], chunks[i + 1])
               for i in range(0, len(chunks) - 1, 2)]
        if len(chunks) % 2:
            nxt.append(chunks[-1])
        chunks = nxt
    return chunks[0]


def _pool_kernel_single(x_ref, o_ref, *, tl):
    """Whole L fits in one tile: reduce and store a lane-dense (nb, tc) block."""
    x = x_ref[...]
    if tl % _LANE == 0 and tl > _LANE:
        part = _tree_max([x[:, :, j * _LANE:(j + 1) * _LANE]
                          for j in range(tl // _LANE)])
        o_ref[...] = jnp.max(part, axis=-1).astype(o_ref.dtype)
    else:
        o_ref[...] = jnp.max(x, axis=-1).astype(o_ref.dtype)


def _pool_kernel_tiled(x_ref, o_ref, acc_ref, *, tl, L, n_l_blocks, fill):
    """L tiled (tl % 128 == 0): carry per-lane running maxima in VMEM scratch."""
    k = pl.program_id(2)
    last = n_l_blocks - 1

    def chunk(j):
        return x_ref[:, :, j * _LANE:(j + 1) * _LANE]

    @pl.when(k < last)
    def _body():                       # full tiles: pure VPU maxima, no mask
        part = _tree_max([chunk(j) for j in range(tl // _LANE)])

        @pl.when(k == 0)
        def _init():
            acc_ref[...] = part

        @pl.when(k > 0)
        def _accum():
            acc_ref[...] = jnp.maximum(acc_ref[...], part)

    @pl.when(k == last)
    def _finalize():
        valid = L - last * tl          # trace-time constant, in (0, tl]
        full_chunks, rem = valid // _LANE, valid % _LANE
        parts = [chunk(j) for j in range(full_chunks)]
        if rem:                        # only the straddling chunk gets masked
            c = chunk(full_chunks)
            lane = lax.broadcasted_iota(jnp.int32, c.shape, 2)
            parts.append(jnp.where(lane < rem, c, jnp.asarray(fill, c.dtype)))
        tail = _tree_max(parts)
        out = jnp.maximum(acc_ref[...], tail)
        o_ref[...] = jnp.max(out, axis=-1).astype(o_ref.dtype)   # one XLU lane-reduce


def global_max_pool1d(x, *, target_block_bytes=None):
    """x: (N, C, L) -> (N, C, 1), max over L.  Matches F.max_pool1d(x, kernel_size=L)."""
    N, C, L = x.shape
    dtype = x.dtype
    itemsize = jnp.dtype(dtype).itemsize
    sub = _sublane(dtype)

    vmem_cap = _device_vmem_bytes()
    if target_block_bytes is None:
        # v7x (64 MiB VMEM, ~3.2 TB/s HBM) wants bigger blocks than v5e/v6e (128 MiB).
        target_block_bytes = 12 * 2**20 if vmem_cap <= 80 * 2**20 else 8 * 2**20
    budget = max(1, min(int(target_block_bytes), vmem_cap // 5))

    C_pad = _round_up(C, sub)

    # ---- tile selection (all sizes are (sublane, lane)-padded bytes) ----------
    nb_min = N if N <= sub else sub            # == N (full dim) or a sublane multiple

    # C axis: tile only when even a minimal (nb_min, C, 128) block blows the budget.
    if C > _LANE and nb_min * C_pad * _LANE * itemsize > budget:
        tc = max(_LANE, (budget // (nb_min * _LANE * itemsize)) // _LANE * _LANE)
        tc = min(tc, _round_up(C, _LANE))
        if tc >= C:
            tc = C
    else:
        tc = C
    c_tiled = tc != C
    tc_pad = tc if c_tiled else C_pad          # tiled tc is already a lane multiple

    # L axis
    tl_cap = (budget // (nb_min * tc_pad * itemsize)) // _LANE * _LANE
    tl_cap = max(_LANE, min(tl_cap, _MAX_TL))
    if _round_up(L, _LANE) <= tl_cap:
        tl = L
    else:
        tl = tl_cap
        if L % _LANE == 0:
            for cand in range(tl_cap, _LANE - 1, -_LANE):
                if L % cand == 0:              # prefer a tile dividing L: no tail mask
                    tl = cand
                    break
    n_l_blocks = pl.cdiv(L, tl)

    # N axis
    if (not c_tiled) and n_l_blocks == 1:
        row_bytes = C_pad * _round_up(tl, _LANE) * itemsize
        nb = min(N, max(nb_min, budget // row_bytes))
        if nb < N:
            nb = max(sub, (nb // sub) * sub)   # nb must be a sublane multiple or == N
        if N >= 2 * sub:                       # keep >= 2 N-blocks: both v7x TCs busy
            nb = min(nb, _round_up(-(-N // 2), sub))
    else:
        nb = nb_min
    # TODO(synk): for N == 1 with very large L, split L across two parallel pallas_calls
    # (combined with one jnp.maximum) so the second v7x TensorCore is not idle.

    n_n_blocks = pl.cdiv(N, nb)
    n_c_blocks = pl.cdiv(C, tc)

    if n_l_blocks == 1:
        kernel = functools.partial(_pool_kernel_single, tl=tl)
        scratch_shapes = []
    else:
        kernel = functools.partial(_pool_kernel_tiled, tl=tl, L=L,
                                   n_l_blocks=n_l_blocks, fill=_neg_limit(dtype))
        scratch_shapes = [pltpu.VMEM((nb, tc, _LANE), dtype)]

    # ---- VMEM accounting (padded, double-buffered in/out + scratch + slack) ----
    in_block = nb * tc_pad * _round_up(tl, _LANE) * itemsize
    out_block = _round_up(nb, sub) * _round_up(tc, _LANE) * itemsize
    acc_block = nb * tc_pad * _LANE * itemsize if n_l_blocks > 1 else 0
    vmem_needed = 2 * in_block + 2 * out_block + acc_block + (2 << 20)
    vmem_limit = min(max(vmem_needed, 32 * 2**20), vmem_cap * 3 // 4)
    vmem_limit = max(vmem_limit, vmem_needed)  # never below what the blocks need

    out = pl.pallas_call(
        kernel,
        out_shape=jax.ShapeDtypeStruct((N, C), dtype),
        grid=(n_n_blocks, n_c_blocks, n_l_blocks),
        in_specs=[pl.BlockSpec((nb, tc, tl), lambda i, j, k: (i, j, k))],
        out_specs=pl.BlockSpec((nb, tc), lambda i, j, k: (i, j)),
        scratch_shapes=scratch_shapes,
        compiler_params=pltpu.CompilerParams(
            dimension_semantics=("parallel", "parallel", "arbitrary"),
            vmem_limit_bytes=int(vmem_limit),
        ),
        cost_estimate=pl.CostEstimate(
            flops=N * C * L,
            transcendentals=0,
            bytes_accessed=N * C * L * itemsize + N * C * itemsize,
        ),
    )(x)

    return out.reshape(N, C, 1)


if __name__ == "__main__":
    key = jax.random.PRNGKey(0)

    # Small shape consistent with the module's forward (N, C, L).
    N, C, L = 2, 4, 16
    x = jax.random.normal(key, (N, C, L), dtype=jnp.float32)
    out = jax.block_until_ready(global_max_pool1d(x))
    ref = jnp.max(x, axis=2, keepdims=True)
    assert out.shape == (N, C, 1), out.shape
    assert jnp.allclose(out, ref), "mismatch vs reference (single-tile path)"

    # L-tiled running-max path (tiny budget forces tl=128, 4 L tiles).
    x2 = jax.random.normal(jax.random.PRNGKey(1), (4, 8, 512), dtype=jnp.float32)
    out2 = jax.block_until_ready(global_max_pool1d(x2, target_block_bytes=8 * 1024))
    assert jnp.allclose(out2, jnp.max(x2, axis=2, keepdims=True)), "mismatch (tiled path)"

    # L-tiled path with a partial last tile (exercises the straddling-chunk mask).
    x3 = jax.random.normal(jax.random.PRNGKey(2), (2, 4, 300), dtype=jnp.float32)
    out3 = jax.block_until_ready(global_max_pool1d(x3, target_block_bytes=8 * 1024))
    assert jnp.allclose(out3, jnp.max(x3, axis=2, keepdims=True)), "mismatch (tail mask)"

    # C-tiled path (extra parallel C grid axis) with a partial last C block.
    x4 = jax.random.normal(jax.random.PRNGKey(3), (2, 160, 16), dtype=jnp.float32)
    out4 = jax.block_until_ready(global_max_pool1d(x4, target_block_bytes=4 * 1024))
    assert jnp.allclose(out4, jnp.max(x4, axis=2, keepdims=True)), "mismatch (C-tiled path)"

    print("KERNEL_OK")
</pallas_src>

<mosaic_0001>
module attributes {stable_mosaic.version = 11 : i64} {
  func.func @_pool_kernel_single(%arg0: i32, %arg1: i32, %arg2: i32, %arg3: memref<2x4x16xf32, #tpu.memory_space<vmem>>, %arg4: memref<2x4xf32, #tpu.memory_space<vmem>>) attributes {dimension_semantics = [#tpu.dimension_semantics<parallel>, #tpu.dimension_semantics<parallel>, #tpu.dimension_semantics<arbitrary>], iteration_bounds = array<i64: 1, 1, 1>, scalar_prefetch = 0 : i64, scratch_operands = 0 : i64, tpu.core_type = #tpu.core_type<tc>, window_params = [{transform_indices = @transform_0, window_bounds = array<i64: 2, 4, 16>}, {transform_indices = @transform_1, window_bounds = array<i64: 2, 4>}]} {
    %c0 = arith.constant 0 : index
    %c0_0 = arith.constant 0 : index
    %c0_1 = arith.constant 0 : index
    %0 = vector.load %arg3[%c0, %c0_0, %c0_1] : memref<2x4x16xf32, #tpu.memory_space<vmem>>, vector<2x4x16xf32>
    %cst = arith.constant dense<0xFF800000> : vector<2x4xf32>
    %1 = vector.multi_reduction <maximumf>, %0, %cst [2] : vector<2x4x16xf32> to vector<2x4xf32>
    %c0_2 = arith.constant 0 : index
    %c0_3 = arith.constant 0 : index
    %2 = vector.load %arg4[%c0_2, %c0_3] : memref<2x4xf32, #tpu.memory_space<vmem>>, vector<2x4xf32>
    tpu.vector_store %arg4[%c0_2, %c0_3], %1 {strides = array<i32>} : memref<2x4xf32, #tpu.memory_space<vmem>>, vector<2x4xf32>,
    return
  }
  func.func @transform_0(%arg0: i32, %arg1: i32, %arg2: i32) -> (i32, i32, i32) {
    %c0_i32 = arith.constant 0 : i32
    return %arg0, %arg1, %arg2 : i32, i32, i32
  }
  func.func @transform_1(%arg0: i32, %arg1: i32, %arg2: i32) -> (i32, i32) {
    %c0_i32 = arith.constant 0 : i32
    return %arg0, %arg1 : i32, i32
  }
}

</mosaic_0001>

<llo_original>
// kernel: tpu_custom_call.1
$region0: #{tpu_custom_call.1}
  #allocation0 [shape = 'u32[]', space=smem, size = 0x4, offset = 0x4, fixed_abs, tag = 'smem constant byte address 0x4 - core index']
  #allocation1 [shape = 'u32[72,128]{1,0:T(1,128)}', space=vmem, size = 0x9000, scoped, tag = 'internal scratch']
  %s0 = inlined_call_operand.hbm [shape: f32[2,4,16], index: 0, kind: input, shape index: {}]
  %s1 = inlined_call_operand.hbm [shape: f32[2,4], index: 1, kind: output, shape index: {}]
  %s2 = sld [smem:[#allocation0]]
  $region18: #{tpu_custom_call.1} parent=0
    _
  %s4 = ssub.s32 1, %s2
  %s5 = scalar_select 0, %s4, %s2
  $region1: #{tpu_custom_call.1} parent=0
    #allocation2 [shape = 'u8[4096]{0}', space=vmem, size = 0x1000, scoped, tag = 'input window, operand 0, single buffered']
    #allocation3 [shape = 's32[1]{0}', space=sflag, size = 0x4, scoped, tag = 'scoped memory for tpu_custom_call.1']
    #allocation4 [shape = 's32[1]{0}', space=sflag, size = 0x4, scoped, tag = 'scoped memory for tpu_custom_call.1']
    #allocation5 [shape = 'u8[1024]{0}', space=vmem, size = 0x400, scoped, tag = 'output window, operand 0, single buffered']
    %6 = vsyncpa [#allocation3], 0
    %7 = vsyncpa [#allocation4], 0
    // Predicated region
    $region2: #{tpu_custom_call.1} parent=1 // pred_check
      _
    $region3: #{tpu_custom_call.1} parent=1 // pred_check_branch
      %9 = sbr.rel (0) target = $region5
    $region4: #{tpu_custom_call.1} parent=1 // pred_region
      %11 = vsyncadd [#allocation3], 0
      %s12 = sshll.u32 %s0, 4
      %s13 = int_to_ptr.hbm [resolvable:$true] %s12
      %s14 = sshll.u32 [#allocation2], 4
      %s15 = int_to_ptr.vmem [resolvable:$true] %s14
      %20 = dma.hbm_to_vmem [thread:$0]  %s13, 128, %s15, [#allocation3], 64, 64, 4
    $region5: #{tpu_custom_call.1} parent=1 // pred_fallthru
      _
    // Predicated region
    $region6: #{tpu_custom_call.1} parent=1 // pred_check
      _
    $region7: #{tpu_custom_call.1} parent=1 // pred_check_branch
      %22 = sbr.rel (0) target = $region9
    $region8: #{tpu_custom_call.1} parent=1 // pred_region
      %24 = dma.done [#allocation3], 128
    $region9: #{tpu_custom_call.1} parent=1 // pred_fallthru
      _
    %v25 = vld [vmem:[#allocation2] sm:$0xf]
    %v26 = vld [vmem:[#allocation2 + $0x4] sm:$0xf]
    %vm27 = vcmask 125952
    %v28 = vsel %vm27, %v25, -inf
    %29 = vmax.xlane.f32.xlu0 %v28
    %v30 = vpop.xlane.xlu0 %29
    %v31 = vsel %vm27, %v26, -inf
    %32 = vmax.xlane.f32.xlu0 %v31
    %v33 = vpop.xlane.xlu0 %32
    %v36 = vlaneseq
    %v37 = vand.u32 %v36, 127
    %v38 = vperm.slane %v30, %v37
    %v39 = vperm.slane %v33, %v37
    %vm40 = vcmask 1041409
    %v41 = vsel %vm40, %v39, %v38
    %vm43 = vcmask 25600
    %44 = vst.msk [vmem:[#allocation5] sm:$0x3] %vm43, %v41
    // Predicated region
    $region10: #{tpu_custom_call.1} parent=1 // pred_check
      _
    $region11: #{tpu_custom_call.1} parent=1 // pred_check_branch
      %46 = sbr.rel (0) target = $region13
    $region12: #{tpu_custom_call.1} parent=1 // pred_region
      %48 = vsyncadd [#allocation4], 0
      %s50 = sshll.u32 [#allocation5], 4
      %s51 = int_to_ptr.vmem [resolvable:$true] %s50
      %s52 = sshll.u32 %s1, 4
      %s53 = int_to_ptr.hbm [resolvable:$true] %s52
      %55 = dma.vmem_to_hbm [thread:$0]  %s51, 32, %s53, [#allocation4]
    $region13: #{tpu_custom_call.1} parent=1 // pred_fallthru
      _
    // Predicated region
    $region14: #{tpu_custom_call.1} parent=1 // pred_check
      _
    $region15: #{tpu_custom_call.1} parent=1 // pred_check_branch
      %57 = sbr.rel (0) target = $region17
    $region16: #{tpu_custom_call.1} parent=1 // pred_region
      %59 = dma.done [#allocation4], 32
    $region17: #{tpu_custom_call.1} parent=1 // pred_fallthru
      _
    %60 = vsyncpa [#allocation3], 1
    %61 = vsyncpa [#allocation4], 1

</llo_original>
